<compile_context>
chip_gen: v5e
topology: v5e:2x2
jax: 0.10.0
libtpu: 0.0.40
codegen_flags: <defaults>
</compile_context>

<pallas_src>
import jax
import jax.numpy as jnp
from jax.experimental import pallas as pl
from jax.experimental.pallas import tpu as pltpu

EPS = 1e-5


def _toeplitz_weights(w, width):
    """w: [9, Cin, Cout] with k = ky*3+kx  ->  [3, width*Cin, width*Cout] f32.

    T[ky][w_in*Cin+ci, w_out*Cout+co] = w[ky*3+kx, ci, co] with kx = w_in-w_out+1
    (0 outside 0..2), so the kx taps and the zero padding along W are realized
    by a plain matmul over W-flattened rows."""
    _, cin, cout = w.shape
    wk = w.reshape(3, 3, cin, cout)
    w_in = jnp.arange(width)[:, None]
    w_out = jnp.arange(width)[None, :]
    kx = w_in - w_out + 1                                   # [W, W]
    valid = ((kx >= 0) & (kx < 3)).astype(w.dtype)
    band = wk[:, jnp.clip(kx, 0, 2), :, :]                  # [3, W, W, cin, cout]
    band = band * valid[None, :, :, None, None]
    band = jnp.transpose(band, (0, 1, 3, 2, 4))             # [3, W_in, cin, W_out, cout]
    return band.reshape(3, width * cin, width * cout)


def _make_kernel(batch, height, width, cout):
    M = batch * height
    wko = width * cout
    inv_count = 1.0 / float(batch * height * width)

    def conv3x3(lhs_bf16, t_ref, h_idx):
        # One MXU push per conv: K = lhs K-dim, N = 3*W*Cout lanes (one 128-lane
        # group per ky tap).  Lane slices below are vreg-aligned (multiples of 128).
        p = jnp.dot(lhs_bf16, t_ref[...], preferred_element_type=jnp.float32)
        p0 = p[:, 0:wko]              # ky=0 tap: contribution of input row h-1
        p1 = p[:, wko:2 * wko]        # ky=1 tap: input row h
        p2 = p[:, 2 * wko:3 * wko]    # ky=2 tap: input row h+1
        # Align taps with XLU rolls; boundary masks realize the zero H-padding
        # (they also kill any cross-image / wrap-around rows).
        up = jnp.where(h_idx != 0, pltpu.roll(p0, 1, axis=0), 0.0)
        dn = jnp.where(h_idx != height - 1, pltpu.roll(p2, M - 1, axis=0), 0.0)
        return p1 + up + dn

    def bn_relu(y, fe_ref, g_ref, b_ref):
        # Single sweep: per-lane sum & sumsq, stacked into one (2, W*Cout)
        # operand; the 0/1 fold+broadcast matmul sums each channel over its W
        # lane groups and broadcasts straight back to the lane layout.
        colsum = jnp.sum(y, axis=0, keepdims=True)               # [1, W*Cout]
        colsq = jnp.sum(y * y, axis=0, keepdims=True)            # [1, W*Cout]
        stats = jnp.concatenate([colsum, colsq], axis=0)         # [2, W*Cout]
        stats_l = jnp.dot(stats, fe_ref[...],
                          preferred_element_type=jnp.float32) * inv_count
        mean_l = stats_l[0:1]
        # TODO(synk): E[x^2]-E[x]^2 loses precision at large N*H*W; switch to an
        # offset-subtracted / two-pass variance for real sizes.
        var_l = stats_l[1:2] - mean_l * mean_l                   # biased var
        scale_l = g_ref[...] * jax.lax.rsqrt(var_l + EPS)
        shift_l = b_ref[...] - mean_l * scale_l
        return jnp.maximum(y * scale_l + shift_l, 0.0)

    def kernel(x_ref, t1_ref, t2_ref, fe_ref,
               g1_ref, b1_ref, g2_ref, b2_ref, out_ref):
        # h index of each flattened row (m = n*H + h).
        h_idx = jax.lax.broadcasted_iota(jnp.int32, (M, wko), 0) % height

        # conv1 -> (dropout p=0 identity) -> BN(train) -> ReLU
        y1 = bn_relu(conv3x3(x_ref[...], t1_ref, h_idx), fe_ref, g1_ref, b1_ref)
        # conv2 -> (dropout p=0 identity) -> BN(train) -> ReLU
        # NOTE: matmul operands are bf16 (f32 accumulation); ~1e-2-level error
        # vs an f32 reference is the accepted precision contract here.
        y2 = bn_relu(conv3x3(y1.astype(jnp.bfloat16), t2_ref, h_idx),
                     fe_ref, g2_ref, b2_ref)
        out_ref[...] = y2

    return kernel


def block_forward(x_nchw, w1, g1, b1, w2, g2, b2):
    """x_nchw: [N,Cin,H,W]. w1:[9,Cin,Cout], w2:[9,Cout,Cout], g*/b*: [1,Cout].
    Returns [N,Cout,H,W]."""
    N, cin, H, W = x_nchw.shape
    cout = w1.shape[-1]
    wk_in = W * cin
    wko = W * cout
    M = N * H

    # Layout plumbing: NCHW -> row-packed [N*H, W*Cin] (channel fastest in lanes),
    # cast to bf16 once (halves HBM->VMEM traffic; it is the matmul LHS dtype).
    # TODO(synk): when chaining blocks in the real network, keep activations in
    # this packed layout between blocks instead of NCHW round trips.
    x2d = jnp.transpose(x_nchw, (0, 2, 3, 1)).reshape(M, wk_in).astype(jnp.bfloat16)

    # Block-banded matmul weights (kx taps + W zero-pad folded in); the three
    # ky taps are concatenated along the output/lane dim -> one matmul per conv.
    t1 = _toeplitz_weights(w1, W)                                   # [3, wk_in, wko]
    t2 = _toeplitz_weights(w2, W)                                   # [3, wko,  wko]
    t1cat = jnp.concatenate([t1[0], t1[1], t1[2]], axis=-1).astype(jnp.bfloat16)
    t2cat = jnp.concatenate([t2[0], t2[1], t2[2]], axis=-1).astype(jnp.bfloat16)

    # Channel-sum-broadcast matrix: lane (w*Cout+c) -> per-channel sum -> lanes.
    eye = jnp.eye(cout, dtype=jnp.float32)
    fold_expand = jnp.tile(eye, (W, W))                             # [wko, wko]

    # gamma/beta pre-tiled to the [1, W*Cout] lane layout (index = w*Cout + c).
    g1l = jnp.tile(g1.reshape(1, cout), (1, W))
    b1l = jnp.tile(b1.reshape(1, cout), (1, W))
    g2l = jnp.tile(g2.reshape(1, cout), (1, W))
    b2l = jnp.tile(b2.reshape(1, cout), (1, W))

    kernel = _make_kernel(N, H, W, cout)

    # VMEM budget derived from the actual footprint (inputs double-buffered),
    # generous headroom, capped well below v7x's 64 MiB per-core VMEM.
    in_bytes = (M * wk_in * 2 + wk_in * 3 * wko * 2 + wko * 3 * wko * 2
                + wko * wko * 4 + 4 * wko * 4 + M * wko * 4)
    vmem_limit = int(min(48 * 1024 * 1024, max(8 * 1024 * 1024, 6 * in_bytes)))

    out2d = pl.pallas_call(
        kernel,
        out_shape=jax.ShapeDtypeStruct((M, wko), jnp.float32),
        grid=(1,),
        in_specs=[
            pl.BlockSpec((M, wk_in), lambda i: (0, 0)),
            pl.BlockSpec((wk_in, 3 * wko), lambda i: (0, 0)),
            pl.BlockSpec((wko, 3 * wko), lambda i: (0, 0)),
            pl.BlockSpec((wko, wko), lambda i: (0, 0)),
            pl.BlockSpec((1, wko), lambda i: (0, 0)),
            pl.BlockSpec((1, wko), lambda i: (0, 0)),
            pl.BlockSpec((1, wko), lambda i: (0, 0)),
            pl.BlockSpec((1, wko), lambda i: (0, 0)),
        ],
        out_specs=pl.BlockSpec((M, wko), lambda i: (0, 0)),
        compiler_params=pltpu.CompilerParams(
            dimension_semantics=("arbitrary",),
            vmem_limit_bytes=vmem_limit,
        ),
    )(x2d, t1cat, t2cat, fold_expand, g1l, b1l, g2l, b2l)

    out = out2d.reshape(N, H, W, cout)
    return jnp.transpose(out, (0, 3, 1, 2))                  # -> NCHW


def ref_forward(x_nchw, w1, g1, b1, w2, g2, b2):
    """Pure-JAX reference for correctness check."""
    x = jnp.transpose(x_nchw, (0, 2, 3, 1))

    def conv(x, w):
        cin, cout = w.shape[-2], w.shape[-1]
        wk = w.reshape(3, 3, cin, cout)
        return jax.lax.conv_general_dilated(
            x, wk, window_strides=(1, 1), padding="SAME",
            dimension_numbers=("NHWC", "HWIO", "NHWC"))

    def bn_relu(y, g, b):
        m = jnp.mean(y, axis=(0, 1, 2), keepdims=True)
        v = jnp.mean((y - m) ** 2, axis=(0, 1, 2), keepdims=True)
        yn = (y - m) / jnp.sqrt(v + EPS) * g.reshape(1, 1, 1, -1) + b.reshape(1, 1, 1, -1)
        return jnp.maximum(yn, 0.0)

    y = bn_relu(conv(x, w1), g1, b1)
    y = bn_relu(conv(y, w2), g2, b2)
    return jnp.transpose(y, (0, 3, 1, 2))


if __name__ == "__main__":
    N, Cin, Cout, H, W = 2, 4, 8, 16, 16

    key = jax.random.PRNGKey(0)
    k1, k2, kx = jax.random.split(key, 3)
    # Conv weights (bias=False) stored as [k, Cin, Cout] with k = ky*3+kx,
    # i.e. w[k, i, o] == torch_weight[o, i, ky, kx].
    w1 = jax.random.normal(k1, (9, Cin, Cout), jnp.float32) * 0.1
    w2 = jax.random.normal(k2, (9, Cout, Cout), jnp.float32) * 0.1
    # BatchNorm affine params, PyTorch default init (gamma=1, beta=0).
    g1 = jnp.ones((1, Cout), jnp.float32)
    b1 = jnp.zeros((1, Cout), jnp.float32)
    g2 = jnp.ones((1, Cout), jnp.float32)
    b2 = jnp.zeros((1, Cout), jnp.float32)

    x = jax.random.normal(kx, (N, Cin, H, W), jnp.float32)

    out = jax.block_until_ready(block_forward(x, w1, g1, b1, w2, g2, b2))
    ref = jax.block_until_ready(ref_forward(x, w1, g1, b1, w2, g2, b2))

    assert out.shape == (N, Cout, H, W)
    err = float(jnp.max(jnp.abs(out - ref)))
    assert err < 5e-2, f"mismatch vs JAX reference: {err}"

    print("KERNEL_OK")
</pallas_src>

<mosaic_0001>
module attributes {stable_mosaic.version = 11 : i64} {
  func.func @kernel(%arg0: i32, %arg1: memref<32x64xbf16, #tpu.memory_space<vmem>>, %arg2: memref<64x384xbf16, #tpu.memory_space<vmem>>, %arg3: memref<128x384xbf16, #tpu.memory_space<vmem>>, %arg4: memref<128x128xf32, #tpu.memory_space<vmem>>, %arg5: memref<1x128xf32, #tpu.memory_space<vmem>>, %arg6: memref<1x128xf32, #tpu.memory_space<vmem>>, %arg7: memref<1x128xf32, #tpu.memory_space<vmem>>, %arg8: memref<1x128xf32, #tpu.memory_space<vmem>>, %arg9: memref<32x128xf32, #tpu.memory_space<vmem>>) attributes {dimension_semantics = [#tpu.dimension_semantics<arbitrary>], iteration_bounds = array<i64: 1>, scalar_prefetch = 0 : i64, scratch_operands = 0 : i64, tpu.core_type = #tpu.core_type<tc>, window_params = [{pipeline_mode = #tpu.pipeline_mode<synchronous>, transform_indices = @transform_0, window_bounds = array<i64: 32, 64>}, {pipeline_mode = #tpu.pipeline_mode<synchronous>, transform_indices = @transform_1, window_bounds = array<i64: 64, 384>}, {pipeline_mode = #tpu.pipeline_mode<synchronous>, transform_indices = @transform_2, window_bounds = array<i64: 128, 384>}, {pipeline_mode = #tpu.pipeline_mode<synchronous>, transform_indices = @transform_3, window_bounds = array<i64: 128, 128>}, {pipeline_mode = #tpu.pipeline_mode<synchronous>, transform_indices = @transform_4, window_bounds = array<i64: 1, 128>}, {pipeline_mode = #tpu.pipeline_mode<synchronous>, transform_indices = @transform_5, window_bounds = array<i64: 1, 128>}, {pipeline_mode = #tpu.pipeline_mode<synchronous>, transform_indices = @transform_6, window_bounds = array<i64: 1, 128>}, {pipeline_mode = #tpu.pipeline_mode<synchronous>, transform_indices = @transform_7, window_bounds = array<i64: 1, 128>}, {pipeline_mode = #tpu.pipeline_mode<synchronous>, transform_indices = @transform_8, window_bounds = array<i64: 32, 128>}]} {
    %0 = tpu.iota {dimensions = array<i32: 0>} : vector<32x128xi32>
    %c16_i32 = arith.constant 16 : i32
    %c0_i32 = arith.constant 0 : i32
    %1 = arith.cmpi eq, %c16_i32, %c0_i32 : i32
    %c1_i32 = arith.constant 1 : i32
    %2 = arith.select %1, %c1_i32, %c16_i32 : i32
    %3 = vector.broadcast %2 : i32 to vector<32x128xi32>
    %4 = arith.remsi %0, %3 : vector<32x128xi32>
    %c0_i32_0 = arith.constant 0 : i32
    %5 = vector.broadcast %c0_i32_0 : i32 to vector<32x128xi32>
    %6 = arith.cmpi ne, %4, %5 : vector<32x128xi32>
    %c0_i32_1 = arith.constant 0 : i32
    %7 = vector.broadcast %c0_i32_1 : i32 to vector<32x128xi32>
    %8 = arith.cmpi slt, %4, %7 : vector<32x128xi32>
    %c0_i32_2 = arith.constant 0 : i32
    %9 = arith.cmpi slt, %2, %c0_i32_2 : i32
    %10 = vector.broadcast %9 : i1 to vector<32x128xi1>
    %11 = vector.broadcast %10 : vector<32x128xi1> to vector<32x128xi1>
    %12 = arith.xori %8, %11 : vector<32x128xi1>
    %13 = arith.andi %12, %6 : vector<32x128xi1>
    %14 = vector.broadcast %2 : i32 to vector<32x128xi32>
    %15 = arith.addi %4, %14 : vector<32x128xi32>
    %16 = arith.select %13, %15, %4 : vector<32x128xi1>, vector<32x128xi32>
    %c0 = arith.constant 0 : index
    %c0_3 = arith.constant 0 : index
    %17 = vector.load %arg1[%c0, %c0_3] : memref<32x64xbf16, #tpu.memory_space<vmem>>, vector<32x64xbf16>
    %c0_4 = arith.constant 0 : index
    %c0_5 = arith.constant 0 : index
    %18 = vector.load %arg2[%c0_4, %c0_5] : memref<64x384xbf16, #tpu.memory_space<vmem>>, vector<64x384xbf16>
    %cst = arith.constant dense<0.000000e+00> : vector<32x384xf32>
    %19 = tpu.matmul %17, %18, %cst {dimension_numbers = #tpu.dot_dimension_numbers<[1], [0], [0], [1], [0, 0, 1, 1], [], []>} : vector<32x64xbf16>, vector<64x384xbf16>, vector<32x384xf32> -> vector<32x384xf32>
    %20 = vector.extract_strided_slice %19 {offsets = [0, 0], sizes = [32, 128], strides = [1, 1]} : vector<32x384xf32> to vector<32x128xf32>
    %21 = vector.extract_strided_slice %19 {offsets = [0, 128], sizes = [32, 128], strides = [1, 1]} : vector<32x384xf32> to vector<32x128xf32>
    %22 = vector.extract_strided_slice %19 {offsets = [0, 256], sizes = [32, 128], strides = [1, 1]} : vector<32x384xf32> to vector<32x128xf32>
    %c0_i32_6 = arith.constant 0 : i32
    %23 = vector.broadcast %c0_i32_6 : i32 to vector<32x128xi32>
    %24 = arith.cmpi ne, %16, %23 : vector<32x128xi32>
    %c1_i32_7 = arith.constant 1 : i32
    %25 = tpu.dynamic_rotate %20 by %c1_i32_7 dim 0 : vector<32x128xf32>, i32 -> vector<32x128xf32>
    %cst_8 = arith.constant 0.000000e+00 : f32
    %26 = vector.broadcast %cst_8 : f32 to vector<32x128xf32>
    %27 = arith.select %24, %25, %26 : vector<32x128xi1>, vector<32x128xf32>
    %c15_i32 = arith.constant 15 : i32
    %28 = vector.broadcast %c15_i32 : i32 to vector<32x128xi32>
    %29 = arith.cmpi ne, %16, %28 : vector<32x128xi32>
    %c31_i32 = arith.constant 31 : i32
    %30 = tpu.dynamic_rotate %22 by %c31_i32 dim 0 : vector<32x128xf32>, i32 -> vector<32x128xf32>
    %cst_9 = arith.constant 0.000000e+00 : f32
    %31 = vector.broadcast %cst_9 : f32 to vector<32x128xf32>
    %32 = arith.select %29, %30, %31 : vector<32x128xi1>, vector<32x128xf32>
    %33 = arith.addf %21, %27 : vector<32x128xf32>
    %34 = arith.addf %33, %32 : vector<32x128xf32>
    %cst_10 = arith.constant dense<0.000000e+00> : vector<128xf32>
    %35 = vector.multi_reduction <add>, %34, %cst_10 [0] : vector<32x128xf32> to vector<128xf32>
    %36 = vector.shape_cast %35 : vector<128xf32> to vector<1x128xf32>
    %37 = arith.mulf %34, %34 : vector<32x128xf32>
    %cst_11 = arith.constant dense<0.000000e+00> : vector<128xf32>
    %38 = vector.multi_reduction <add>, %37, %cst_11 [0] : vector<32x128xf32> to vector<128xf32>
    %39 = vector.shape_cast %38 : vector<128xf32> to vector<1x128xf32>
    %40 = tpu.concatenate %36, %39 in 0 : vector<1x128xf32>, vector<1x128xf32> -> vector<2x128xf32>
    %c0_12 = arith.constant 0 : index
    %c0_13 = arith.constant 0 : index
    %41 = vector.load %arg4[%c0_12, %c0_13] : memref<128x128xf32, #tpu.memory_space<vmem>>, vector<128x128xf32>
    %cst_14 = arith.constant dense<0.000000e+00> : vector<2x128xf32>
    %42 = tpu.matmul %40, %41, %cst_14 {dimension_numbers = #tpu.dot_dimension_numbers<[1], [0], [0], [1], [0, 0, 1, 1], [], []>} : vector<2x128xf32>, vector<128x128xf32>, vector<2x128xf32> -> vector<2x128xf32>
    %cst_15 = arith.constant 0.001953125 : f32
    %43 = vector.broadcast %cst_15 : f32 to vector<2x128xf32>
    %44 = arith.mulf %42, %43 : vector<2x128xf32>
    %45 = vector.extract_strided_slice %44 {offsets = [0, 0], sizes = [1, 128], strides = [1, 1]} : vector<2x128xf32> to vector<1x128xf32>
    %46 = vector.extract_strided_slice %44 {offsets = [1, 0], sizes = [1, 128], strides = [1, 1]} : vector<2x128xf32> to vector<1x128xf32>
    %47 = arith.mulf %45, %45 : vector<1x128xf32>
    %48 = arith.subf %46, %47 : vector<1x128xf32>
    %c0_16 = arith.constant 0 : index
    %c0_17 = arith.constant 0 : index
    %49 = vector.load %arg5[%c0_16, %c0_17] : memref<1x128xf32, #tpu.memory_space<vmem>>, vector<1x128xf32>
    %cst_18 = arith.constant 9.99999974E-6 : f32
    %50 = vector.broadcast %cst_18 : f32 to vector<1x128xf32>
    %51 = arith.addf %48, %50 : vector<1x128xf32>
    %52 = math.rsqrt %51 : vector<1x128xf32>
    %53 = arith.mulf %49, %52 : vector<1x128xf32>
    %c0_19 = arith.constant 0 : index
    %c0_20 = arith.constant 0 : index
    %54 = vector.load %arg6[%c0_19, %c0_20] : memref<1x128xf32, #tpu.memory_space<vmem>>, vector<1x128xf32>
    %55 = arith.mulf %45, %53 : vector<1x128xf32>
    %56 = arith.subf %54, %55 : vector<1x128xf32>
    %57 = vector.broadcast %53 : vector<1x128xf32> to vector<32x128xf32>
    %58 = arith.mulf %34, %57 : vector<32x128xf32>
    %59 = vector.broadcast %56 : vector<1x128xf32> to vector<32x128xf32>
    %60 = arith.addf %58, %59 : vector<32x128xf32>
    %cst_21 = arith.constant 0.000000e+00 : f32
    %61 = vector.broadcast %cst_21 : f32 to vector<32x128xf32>
    %62 = arith.maximumf %60, %61 : vector<32x128xf32>
    %63 = arith.truncf %62 : vector<32x128xf32> to vector<32x128xbf16>
    %c0_22 = arith.constant 0 : index
    %c0_23 = arith.constant 0 : index
    %64 = vector.load %arg3[%c0_22, %c0_23] : memref<128x384xbf16, #tpu.memory_space<vmem>>, vector<128x384xbf16>
    %cst_24 = arith.constant dense<0.000000e+00> : vector<32x384xf32>
    %65 = tpu.matmul %63, %64, %cst_24 {dimension_numbers = #tpu.dot_dimension_numbers<[1], [0], [0], [1], [0, 0, 1, 1], [], []>} : vector<32x128xbf16>, vector<128x384xbf16>, vector<32x384xf32> -> vector<32x384xf32>
    %66 = vector.extract_strided_slice %65 {offsets = [0, 0], sizes = [32, 128], strides = [1, 1]} : vector<32x384xf32> to vector<32x128xf32>
    %67 = vector.extract_strided_slice %65 {offsets = [0, 128], sizes = [32, 128], strides = [1, 1]} : vector<32x384xf32> to vector<32x128xf32>
    %68 = vector.extract_strided_slice %65 {offsets = [0, 256], sizes = [32, 128], strides = [1, 1]} : vector<32x384xf32> to vector<32x128xf32>
    %c0_i32_25 = arith.constant 0 : i32
    %69 = vector.broadcast %c0_i32_25 : i32 to vector<32x128xi32>
    %70 = arith.cmpi ne, %16, %69 : vector<32x128xi32>
    %c1_i32_26 = arith.constant 1 : i32
    %71 = tpu.dynamic_rotate %66 by %c1_i32_26 dim 0 : vector<32x128xf32>, i32 -> vector<32x128xf32>
    %cst_27 = arith.constant 0.000000e+00 : f32
    %72 = vector.broadcast %cst_27 : f32 to vector<32x128xf32>
    %73 = arith.select %70, %71, %72 : vector<32x128xi1>, vector<32x128xf32>
    %c15_i32_28 = arith.constant 15 : i32
    %74 = vector.broadcast %c15_i32_28 : i32 to vector<32x128xi32>
    %75 = arith.cmpi ne, %16, %74 : vector<32x128xi32>
    %c31_i32_29 = arith.constant 31 : i32
    %76 = tpu.dynamic_rotate %68 by %c31_i32_29 dim 0 : vector<32x128xf32>, i32 -> vector<32x128xf32>
    %cst_30 = arith.constant 0.000000e+00 : f32
    %77 = vector.broadcast %cst_30 : f32 to vector<32x128xf32>
    %78 = arith.select %75, %76, %77 : vector<32x128xi1>, vector<32x128xf32>
    %79 = arith.addf %67, %73 : vector<32x128xf32>
    %80 = arith.addf %79, %78 : vector<32x128xf32>
    %cst_31 = arith.constant dense<0.000000e+00> : vector<128xf32>
    %81 = vector.multi_reduction <add>, %80, %cst_31 [0] : vector<32x128xf32> to vector<128xf32>
    %82 = vector.shape_cast %81 : vector<128xf32> to vector<1x128xf32>
    %83 = arith.mulf %80, %80 : vector<32x128xf32>
    %cst_32 = arith.constant dense<0.000000e+00> : vector<128xf32>
    %84 = vector.multi_reduction <add>, %83, %cst_32 [0] : vector<32x128xf32> to vector<128xf32>
    %85 = vector.shape_cast %84 : vector<128xf32> to vector<1x128xf32>
    %86 = tpu.concatenate %82, %85 in 0 : vector<1x128xf32>, vector<1x128xf32> -> vector<2x128xf32>
    %c0_33 = arith.constant 0 : index
    %c0_34 = arith.constant 0 : index
    %87 = vector.load %arg4[%c0_33, %c0_34] : memref<128x128xf32, #tpu.memory_space<vmem>>, vector<128x128xf32>
    %cst_35 = arith.constant dense<0.000000e+00> : vector<2x128xf32>
    %88 = tpu.matmul %86, %87, %cst_35 {dimension_numbers = #tpu.dot_dimension_numbers<[1], [0], [0], [1], [0, 0, 1, 1], [], []>} : vector<2x128xf32>, vector<128x128xf32>, vector<2x128xf32> -> vector<2x128xf32>
    %cst_36 = arith.constant 0.001953125 : f32
    %89 = vector.broadcast %cst_36 : f32 to vector<2x128xf32>
    %90 = arith.mulf %88, %89 : vector<2x128xf32>
    %91 = vector.extract_strided_slice %90 {offsets = [0, 0], sizes = [1, 128], strides = [1, 1]} : vector<2x128xf32> to vector<1x128xf32>
    %92 = vector.extract_strided_slice %90 {offsets = [1, 0], sizes = [1, 128], strides = [1, 1]} : vector<2x128xf32> to vector<1x128xf32>
    %93 = arith.mulf %91, %91 : vector<1x128xf32>
    %94 = arith.subf %92, %93 : vector<1x128xf32>
    %c0_37 = arith.constant 0 : index
    %c0_38 = arith.constant 0 : index
    %95 = vector.load %arg7[%c0_37, %c0_38] : memref<1x128xf32, #tpu.memory_space<vmem>>, vector<1x128xf32>
    %cst_39 = arith.constant 9.99999974E-6 : f32
    %96 = vector.broadcast %cst_39 : f32 to vector<1x128xf32>
    %97 = arith.addf %94, %96 : vector<1x128xf32>
    %98 = math.rsqrt %97 : vector<1x128xf32>
    %99 = arith.mulf %95, %98 : vector<1x128xf32>
    %c0_40 = arith.constant 0 : index
    %c0_41 = arith.constant 0 : index
    %100 = vector.load %arg8[%c0_40, %c0_41] : memref<1x128xf32, #tpu.memory_space<vmem>>, vector<1x128xf32>
    %101 = arith.mulf %91, %99 : vector<1x128xf32>
    %102 = arith.subf %100, %101 : vector<1x128xf32>
    %103 = vector.broadcast %99 : vector<1x128xf32> to vector<32x128xf32>
    %104 = arith.mulf %80, %103 : vector<32x128xf32>
    %105 = vector.broadcast %102 : vector<1x128xf32> to vector<32x128xf32>
    %106 = arith.addf %104, %105 : vector<32x128xf32>
    %cst_42 = arith.constant 0.000000e+00 : f32
    %107 = vector.broadcast %cst_42 : f32 to vector<32x128xf32>
    %108 = arith.maximumf %106, %107 : vector<32x128xf32>
    %c0_43 = arith.constant 0 : index
    %c0_44 = arith.constant 0 : index
    %109 = vector.load %arg9[%c0_43, %c0_44] : memref<32x128xf32, #tpu.memory_space<vmem>>, vector<32x128xf32>
    tpu.vector_store %arg9[%c0_43, %c0_44], %108 {strides = array<i32>} : memref<32x128xf32, #tpu.memory_space<vmem>>, vector<32x128xf32>,
    return
  }
  func.func @transform_0(%arg0: i32) -> (i32, i32) {
    %c0_i32 = arith.constant 0 : i32
    %c0_i32_0 = arith.constant 0 : i32
    %c0_i32_1 = arith.constant 0 : i32
    return %c0_i32, %c0_i32_0 : i32, i32
  }
  func.func @transform_1(%arg0: i32) -> (i32, i32) {
    %c0_i32 = arith.constant 0 : i32
    %c0_i32_0 = arith.constant 0 : i32
    %c0_i32_1 = arith.constant 0 : i32
    return %c0_i32, %c0_i32_0 : i32, i32
  }
  func.func @transform_2(%arg0: i32) -> (i32, i32) {
    %c0_i32 = arith.constant 0 : i32
    %c0_i32_0 = arith.constant 0 : i32
    %c0_i32_1 = arith.constant 0 : i32
    return %c0_i32, %c0_i32_0 : i32, i32
  }
  func.func @transform_3(%arg0: i32) -> (i32, i32) {
    %c0_i32 = arith.constant 0 : i32
    %c0_i32_0 = arith.constant 0 : i32
    %c0_i32_1 = arith.constant 0 : i32
    return %c0_i32, %c0_i32_0 : i32, i32
  }
  func.func @transform_4(%arg0: i32) -> (i32, i32) {
    %c0_i32 = arith.constant 0 : i32
    %c0_i32_0 = arith.constant 0 : i32
    %c0_i32_1 = arith.constant 0 : i32
    return %c0_i32, %c0_i32_0 : i32, i32
  }
  func.func @transform_5(%arg0: i32) -> (i32, i32) {
    %c0_i32 = arith.constant 0 : i32
    %c0_i32_0 = arith.constant 0 : i32
    %c0_i32_1 = arith.constant 0 : i32
    return %c0_i32, %c0_i32_0 : i32, i32
  }
  func.func @transform_6(%arg0: i32) -> (i32, i32) {
    %c0_i32 = arith.constant 0 : i32
    %c0_i32_0 = arith.constant 0 : i32
    %c0_i32_1 = arith.constant 0 : i32
    return %c0_i32, %c0_i32_0 : i32, i32
  }
  func.func @transform_7(%arg0: i32) -> (i32, i32) {
    %c0_i32 = arith.constant 0 : i32
    %c0_i32_0 = arith.constant 0 : i32
    %c0_i32_1 = arith.constant 0 : i32
    return %c0_i32, %c0_i32_0 : i32, i32
  }
  func.func @transform_8(%arg0: i32) -> (i32, i32) {
    %c0_i32 = arith.constant 0 : i32
    %c0_i32_0 = arith.constant 0 : i32
    %c0_i32_1 = arith.constant 0 : i32
    return %c0_i32, %c0_i32_0 : i32, i32
  }
}

</mosaic_0001>

<llo_original>
// kernel: tpu_custom_call.1
$region0: #{tpu_custom_call.1}
  #allocation0 [shape = 'u32[]', space=smem, size = 0x4, offset = 0x4, fixed_abs, tag = 'smem constant byte address 0x4 - core index']
  #allocation1 [shape = 'u32[72,128]{1,0:T(1,128)}', space=vmem, size = 0x9000, scoped, tag = 'internal scratch']
  %s0 = inlined_call_operand.hbm [shape: bf16[32,64], index: 0, kind: input, shape index: {}]
  %s1 = inlined_call_operand.hbm [shape: bf16[64,384], index: 1, kind: input, shape index: {}]
  %s2 = inlined_call_operand.hbm [shape: bf16[128,384], index: 2, kind: input, shape index: {}]
  %s3 = inlined_call_operand.hbm [shape: f32[128,128], index: 3, kind: input, shape index: {}]
  %s4 = inlined_call_operand.vmem [shape: f32[1,128], index: 4, kind: input, shape index: {}]
  %s5 = inlined_call_operand.vmem [shape: f32[1,128], index: 5, kind: input, shape index: {}]
  %s6 = inlined_call_operand.vmem [shape: f32[1,128], index: 6, kind: input, shape index: {}]
  %s7 = inlined_call_operand.vmem [shape: f32[1,128], index: 7, kind: input, shape index: {}]
  %s8 = inlined_call_operand.hbm [shape: f32[32,128], index: 8, kind: output, shape index: {}]
  %s9 = sld [smem:[#allocation0]]
  $region58: #{tpu_custom_call.1} parent=0
    _
  %s11 = ssub.s32 1, %s9
  %s12 = scalar_select 0, %s11, %s9
  $region1: #{tpu_custom_call.1} parent=0
    #allocation2 [shape = 'u8[8192]{0}', space=vmem, size = 0x2000, scoped, tag = 'input window, operand 0, single buffered']
    #allocation3 [shape = 's32[1]{0}', space=sflag, size = 0x4, scoped, tag = 'scoped memory for tpu_custom_call.1']
    #allocation4 [shape = 's32[1]{0}', space=sflag, size = 0x4, scoped, tag = 'scoped memory for tpu_custom_call.1']
    #allocation5 [shape = 'u8[49152]{0}', space=vmem, size = 0xc000, scoped, tag = 'input window, operand 1, single buffered']
    #allocation6 [shape = 's32[1]{0}', space=sflag, size = 0x4, scoped, tag = 'scoped memory for tpu_custom_call.1']
    #allocation7 [shape = 'u8[98304]{0}', space=vmem, size = 0x18000, scoped, tag = 'input window, operand 2, single buffered']
    #allocation8 [shape = 'u8[65536]{0}', space=vmem, size = 0x10000, scoped, tag = 'input window, operand 3, single buffered']
    #allocation9 [shape = 's32[1]{0}', space=sflag, size = 0x4, scoped, tag = 'scoped memory for tpu_custom_call.1']
    #allocation10 [shape = 'u8[16384]{0}', space=vmem, size = 0x4000, scoped, tag = 'output window, operand 0, single buffered']
    %13 = vsyncpa [#allocation3], 0
    %14 = vsyncpa [#allocation6], 0
    %15 = vsyncpa [#allocation9], 0
    %16 = vsyncpa [#allocation4], 0
    // Predicated region
    $region2: #{tpu_custom_call.1} parent=1 // pred_check
      _
    $region3: #{tpu_custom_call.1} parent=1 // pred_check_branch
      %18 = sbr.rel (0) target = $region5
    $region4: #{tpu_custom_call.1} parent=1 // pred_region
      %20 = vsyncadd [#allocation3], 0
      %s21 = sshll.u32 %s0, 4
      %s22 = int_to_ptr.hbm [resolvable:$true] %s21
      %s23 = sshll.u32 [#allocation2], 4
      %s24 = int_to_ptr.vmem [resolvable:$true] %s23
      %29 = dma.hbm_to_vmem [thread:$0]  %s22, 256, %s24, [#allocation3], 64, 64, 4
    $region5: #{tpu_custom_call.1} parent=1 // pred_fallthru
      _
    // Predicated region
    $region6: #{tpu_custom_call.1} parent=1 // pred_check
      _
    $region7: #{tpu_custom_call.1} parent=1 // pred_check_branch
      %31 = sbr.rel (0) target = $region9
    $region8: #{tpu_custom_call.1} parent=1 // pred_region
      %33 = vsyncadd [#allocation6], 0
      %s34 = sshll.u32 %s1, 4
      %s35 = int_to_ptr.hbm [resolvable:$true] %s34
      %s36 = sshll.u32 [#allocation5], 4
      %s37 = int_to_ptr.vmem [resolvable:$true] %s36
      %42 = dma.hbm_to_vmem [thread:$0]  %s35, 1536, %s37, [#allocation6], 192, 192, 12
    $region9: #{tpu_custom_call.1} parent=1 // pred_fallthru
      _
    // Predicated region
    $region10: #{tpu_custom_call.1} parent=1 // pred_check
      _
    $region11: #{tpu_custom_call.1} parent=1 // pred_check_branch
      %44 = sbr.rel (0) target = $region13
    $region12: #{tpu_custom_call.1} parent=1 // pred_region
      %46 = vsyncadd [#allocation6], 0
      %s47 = sshll.u32 %s2, 4
      %s48 = int_to_ptr.hbm [resolvable:$true] %s47
      %s49 = sshll.u32 [#allocation7], 4
      %s50 = int_to_ptr.vmem [resolvable:$true] %s49
      %55 = dma.hbm_to_vmem [thread:$0]  %s48, 3072, %s50, [#allocation6], 192, 192, 12
    $region13: #{tpu_custom_call.1} parent=1 // pred_fallthru
      _
    // Predicated region
    $region14: #{tpu_custom_call.1} parent=1 // pred_check
      _
    $region15: #{tpu_custom_call.1} parent=1 // pred_check_branch
      %57 = sbr.rel (0) target = $region17
    $region16: #{tpu_custom_call.1} parent=1 // pred_region
      %59 = vsyncadd [#allocation9], 0
      %s60 = sshll.u32 %s3, 4
      %s61 = int_to_ptr.hbm [resolvable:$true] %s60
      %s62 = sshll.u32 [#allocation8], 4
      %s63 = int_to_ptr.vmem [resolvable:$true] %s62
      %68 = dma.hbm_to_vmem [thread:$0]  %s61, 2048, %s63, [#allocation9], 128, 128, 8
    $region17: #{tpu_custom_call.1} parent=1 // pred_fallthru
      _
    // Predicated region
    $region18: #{tpu_custom_call.1} parent=1 // pred_check
      _
    $region19: #{tpu_custom_call.1} parent=1 // pred_check_branch
      %70 = sbr.rel (0) target = $region21
    $region20: #{tpu_custom_call.1} parent=1 // pred_region
      _
    $region21: #{tpu_custom_call.1} parent=1 // pred_fallthru
      _
    // Predicated region
    $region22: #{tpu_custom_call.1} parent=1 // pred_check
      _
    $region23: #{tpu_custom_call.1} parent=1 // pred_check_branch
      %72 = sbr.rel (0) target = $region25
    $region24: #{tpu_custom_call.1} parent=1 // pred_region
      _
    $region25: #{tpu_custom_call.1} parent=1 // pred_fallthru
      _
    // Predicated region
    $region26: #{tpu_custom_call.1} parent=1 // pred_check
      _
    $region27: #{tpu_custom_call.1} parent=1 // pred_check_branch
      %74 = sbr.rel (0) target = $region29
    $region28: #{tpu_custom_call.1} parent=1 // pred_region
      _
    $region29: #{tpu_custom_call.1} parent=1 // pred_fallthru
      _
    // Predicated region
    $region30: #{tpu_custom_call.1} parent=1 // pred_check
      _
    $region31: #{tpu_custom_call.1} parent=1 // pred_check_branch
      %76 = sbr.rel (0) target = $region33
    $region32: #{tpu_custom_call.1} parent=1 // pred_region
      _
    $region33: #{tpu_custom_call.1} parent=1 // pred_fallthru
      _
    // Predicated region
    $region34: #{tpu_custom_call.1} parent=1 // pred_check
      _
    $region35: #{tpu_custom_call.1} parent=1 // pred_check_branch
      %78 = sbr.rel (0) target = $region37
    $region36: #{tpu_custom_call.1} parent=1 // pred_region
      %80 = dma.done [#allocation3], 256
    $region37: #{tpu_custom_call.1} parent=1 // pred_fallthru
      _
    // Predicated region
    $region38: #{tpu_custom_call.1} parent=1 // pred_check
      _
    $region39: #{tpu_custom_call.1} parent=1 // pred_check_branch
      %82 = sbr.rel (0) target = $region41
    $region40: #{tpu_custom_call.1} parent=1 // pred_region
      %84 = dma.done [#allocation6], 1536
    $region41: #{tpu_custom_call.1} parent=1 // pred_fallthru
      _
    // Predicated region
    $region42: #{tpu_custom_call.1} parent=1 // pred_check
      _
    $region43: #{tpu_custom_call.1} parent=1 // pred_check_branch
      %86 = sbr.rel (0) target = $region45
    $region44: #{tpu_custom_call.1} parent=1 // pred_region
      %88 = dma.done [#allocation6], 3072
    $region45: #{tpu_custom_call.1} parent=1 // pred_fallthru
      _
    // Predicated region
    $region46: #{tpu_custom_call.1} parent=1 // pred_check
      _
    $region47: #{tpu_custom_call.1} parent=1 // pred_check_branch
      %90 = sbr.rel (0) target = $region49
    $region48: #{tpu_custom_call.1} parent=1 // pred_region
      %92 = dma.done [#allocation9], 2048
    $region49: #{tpu_custom_call.1} parent=1 // pred_fallthru
      _
    %v94 = vlaneseq
    %v95 = vshrl.u32 %v94, 7
    %v96 = vadd.s32 %v95, 8
    %v97 = vadd.s32 %v95, 16
    %v98 = vadd.s32 %v95, 24
    %vm99 = vcmp.lt.s32.totalorder %v95, 0
    %v100 = vsub.s32 0, %v95
    %v101 = vsel %vm99, %v100, %v95
    %v102 = vshrl.u32 %v101, 4
    %v103 = vand.u32 %v101, 15
    %v104 = vsub.s32 0, %v103
    %v105 = vsel %vm99, %v104, %v103
    %vm106 = vcmp.lt.s32.totalorder %v96, 0
    %v107 = vsub.s32 0, %v96
    %v108 = vsel %vm106, %v107, %v96
    %v109 = vshrl.u32 %v108, 4
    %v110 = vand.u32 %v108, 15
    %v111 = vsub.s32 0, %v110
    %v112 = vsel %vm106, %v111, %v110
    %vm113 = vcmp.lt.s32.totalorder %v97, 0
    %v114 = vsub.s32 0, %v97
    %v115 = vsel %vm113, %v114, %v97
    %v116 = vshrl.u32 %v115, 4
    %v117 = vand.u32 %v115, 15
    %v118 = vsub.s32 0, %v117
    %v119 = vsel %vm113, %v118, %v117
    %vm120 = vcmp.lt.s32.totalorder %v98, 0
    %v121 = vsub.s32 0, %v98
    %v122 = vsel %vm120, %v121, %v98
    %v123 = vshrl.u32 %v122, 4
    %v124 = vand.u32 %v122, 15
    %v125 = vsub.s32 0, %v124
    %v126 = vsel %vm120, %v125, %v124
    %vm127 = vcmp.ne.s32.totalorder %v105, 0
    %vm128 = vcmp.ne.s32.totalorder %v112, 0
    %vm129 = vcmp.ne.s32.totalorder %v119, 0
    %vm130 = vcmp.ne.s32.totalorder %v126, 0
    %vm131 = vcmp.lt.s32.totalorder %v105, 0
    %vm132 = vcmp.lt.s32.totalorder %v112, 0
    %vm133 = vcmp.lt.s32.totalorder %v119, 0
    %vm134 = vcmp.lt.s32.totalorder %v126, 0
    %vm135 = vmand %vm131, %vm127
    %vm136 = vmand %vm132, %vm128
    %vm137 = vmand %vm133, %vm129
    %vm138 = vmand %vm134, %vm130
    %v139 = vadd.s32 %v105, 16
    %v140 = vadd.s32 %v112, 16
    %v141 = vadd.s32 %v119, 16
    %v142 = vadd.s32 %v126, 16
    %v143 = vsel %vm135, %v139, %v105
    %v144 = vsel %vm136, %v140, %v112
    %v145 = vsel %vm137, %v141, %v119
    %v146 = vsel %vm138, %v142, %v126
    %v147 = vld [vmem:[#allocation2] sm:$0xf]
    %v148 = vld [vmem:[#allocation2 + $0x4] sm:$0xf]
    %v149 = vld [vmem:[#allocation2 + $0x8] sm:$0xf]
    %v150 = vld [vmem:[#allocation2 + $0xc] sm:$0xf]
    %v151 = vld [vmem:[#allocation5] sm:$0xff]
    %v152 = vld [vmem:[#allocation5 + $0x8] sm:$0xf]
    %v153 = vld [vmem:[#allocation5 + $0xc] sm:$0xff]
    %v154 = vld [vmem:[#allocation5 + $0x14] sm:$0xf]
    %v155 = vld [vmem:[#allocation5 + $0x18] sm:$0xff]
    %v156 = vld [vmem:[#allocation5 + $0x20] sm:$0xf]
    %v157 = vld [vmem:[#allocation5 + $0x24] sm:$0xff]
    %v158 = vld [vmem:[#allocation5 + $0x2c] sm:$0xf]
    %v159 = vld [vmem:[#allocation5 + $0x30] sm:$0xff]
    %v160 = vld [vmem:[#allocation5 + $0x38] sm:$0xf]
    %v161 = vld [vmem:[#allocation5 + $0x3c] sm:$0xff]
    %v162 = vld [vmem:[#allocation5 + $0x44] sm:$0xf]
    %v163 = vld [vmem:[#allocation5 + $0x48] sm:$0xff]
    %v164 = vld [vmem:[#allocation5 + $0x50] sm:$0xf]
    %v165 = vld [vmem:[#allocation5 + $0x54] sm:$0xff]
    %v166 = vld [vmem:[#allocation5 + $0x5c] sm:$0xf]
    %v171 = vunpack.c.l.b16 %v147
    %v172 = vunpack.c.l.b16 %v148
    %v173 = vunpack.c.l.b16 %v149
    %v174 = vunpack.c.l.b16 %v150
    %v175 = vpack.c.b16 %v172, %v171
    %v176 = vpack.c.b16 %v174, %v173
    %v193 = vunpack.c.l.b16 %v151
    %v194 = vunpack.c.h.b16 %v151
    %v195 = vunpack.c.l.b16 %v152
    %v196 = vunpack.c.l.b16 %v153
    %v197 = vunpack.c.h.b16 %v153
    %v198 = vunpack.c.l.b16 %v154
    %v199 = vunpack.c.l.b16 %v155
    %v200 = vunpack.c.h.b16 %v155
    %v201 = vunpack.c.l.b16 %v156
    %v202 = vunpack.c.l.b16 %v157
    %v203 = vunpack.c.h.b16 %v157
    %v204 = vunpack.c.l.b16 %v158
    %v205 = vunpack.c.l.b16 %v159
    %v206 = vunpack.c.h.b16 %v159
    %v207 = vunpack.c.l.b16 %v160
    %v208 = vunpack.c.l.b16 %v161
    %v209 = vunpack.c.h.b16 %v161
    %v210 = vunpack.c.l.b16 %v162
    %v211 = vunpack.c.l.b16 %v163
    %v212 = vunpack.c.h.b16 %v163
    %v213 = vunpack.c.l.b16 %v164
    %v214 = vunpack.c.l.b16 %v165
    %v215 = vunpack.c.h.b16 %v165
    %v216 = vunpack.c.l.b16 %v166
    %v217 = vpack.c.b16 %v196, %v193
    %v218 = vpack.c.b16 %v197, %v194
    %v219 = vpack.c.b16 %v198, %v195
    %v220 = vpack.c.b16 %v202, %v199
    %v221 = vpack.c.b16 %v203, %v200
    %v222 = vpack.c.b16 %v204, %v201
    %v223 = vpack.c.b16 %v208, %v205
    %v224 = vpack.c.b16 %v209, %v206
    %v225 = vpack.c.b16 %v210, %v207
    %v226 = vpack.c.b16 %v214, %v211
    %v227 = vpack.c.b16 %v215, %v212
    %v228 = vpack.c.b16 %v216, %v213
    %vm241 = vcmask 523264
    %v243 = vsel %vm241, %v175, 0
    %v246 = vsel %vm241, %v176, 0
    %248 = vmatpush.bf16.msra.mxu0 0
    %249 = vmatpush.bf16.msra.mxu0 0
    %250 = vmatpush.bf16.msra.mxu0 0
    %251 = vmatpush.bf16.msra.mxu0 0
    %252 = vmatpush.bf16.msra.mxu0 %v226
    %253 = vmatpush.bf16.msra.mxu0 %v223
    %254 = vmatpush.bf16.msra.mxu0 %v220
    %255 = vmatpush.bf16.msra.mxu0 %v217
    %256 = vmatmul.bf16.gmra.mxu0 %v243
    %v257 = vpop.f32.mrf.mxu0
    %v258 = vadd.f32 0.0, %v257
    %v259 = vpop.f32.mrf.mxu0
    %v260 = vadd.f32 0.0, %v259
    %261 = vmatmul.bf16.gmra.mxu0 %v246
    %v262 = vpop.f32.mrf.mxu0
    %v263 = vadd.f32 0.0, %v262
    %v264 = vpop.f32.mrf.mxu0
    %v265 = vadd.f32 0.0, %v264
    %266 = vdwg.mxu0
    %267 = vmatpush.bf16.msra.mxu0 0
    %268 = vmatpush.bf16.msra.mxu0 0
    %269 = vmatpush.bf16.msra.mxu0 0
    %270 = vmatpush.bf16.msra.mxu0 0
    %271 = vmatpush.bf16.msra.mxu0 %v227
    %272 = vmatpush.bf16.msra.mxu0 %v224
    %273 = vmatpush.bf16.msra.mxu0 %v221
    %274 = vmatpush.bf16.msra.mxu0 %v218
    %275 = vmatmul.bf16.gmra.mxu0 %v243
    %v276 = vpop.f32.mrf.mxu0
    %v277 = vadd.f32 0.0, %v276
    %v278 = vpop.f32.mrf.mxu0
    %v279 = vadd.f32 0.0, %v278
    %280 = vmatmul.bf16.gmra.mxu0 %v246
    %v281 = vpop.f32.mrf.mxu0
    %v282 = vadd.f32 0.0, %v281
    %v283 = vpop.f32.mrf.mxu0
    %v284 = vadd.f32 0.0, %v283
    %285 = vdwg.mxu0
    %286 = vmatpush.bf16.msra.mxu0 0
    %287 = vmatpush.bf16.msra.mxu0 0
    %288 = vmatpush.bf16.msra.mxu0 0
    %289 = vmatpush.bf16.msra.mxu0 0
    %290 = vmatpush.bf16.msra.mxu0 %v228
    %291 = vmatpush.bf16.msra.mxu0 %v225
    %292 = vmatpush.bf16.msra.mxu0 %v222
    %293 = vmatpush.bf16.msra.mxu0 %v219
    %294 = vmatmul.bf16.gmra.mxu0 %v243
    %v295 = vpop.f32.mrf.mxu0
    %v296 = vadd.f32 0.0, %v295
    %v297 = vpop.f32.mrf.mxu0
    %v298 = vadd.f32 0.0, %v297
    %299 = vmatmul.bf16.gmra.mxu0 %v246
    %v300 = vpop.f32.mrf.mxu0
    %v301 = vadd.f32 0.0, %v300
    %v302 = vpop.f32.mrf.mxu0
    %v303 = vadd.f32 0.0, %v302
    %304 = vdwg.mxu0
    %vm305 = vcmp.ne.s32.totalorder %v143, 0
    %vm306 = vcmp.ne.s32.totalorder %v144, 0
    %vm307 = vcmp.ne.s32.totalorder %v145, 0
    %vm308 = vcmp.ne.s32.totalorder %v146, 0
    %v309 = vrot.slane %v258, 7
    %v310 = vrot.slane %v260, 7
    %v311 = vrot.slane %v263, 7
    %v312 = vrot.slane %v265, 7
    %vm313 = vcmp.lt.s32.totalorder %v95, 1
    %v314 = vsel %vm313, %v311, %v312
    %v315 = vsel %vm313, %v310, %v311
    %v316 = vsel %vm313, %v309, %v310
    %v317 = vsel %vm313, %v312, %v309
    %v318 = vsel %vm305, %v317, 0.0
    %v319 = vsel %vm306, %v316, 0.0
    %v320 = vsel %vm307, %v315, 0.0
    %v321 = vsel %vm308, %v314, 0.0
    %vm322 = vcmp.ne.s32.totalorder %v143, 15
    %vm323 = vcmp.ne.s32.totalorder %v144, 15
    %vm324 = vcmp.ne.s32.totalorder %v145, 15
    %vm325 = vcmp.ne.s32.totalorder %v146, 15
    %v326 = vrot.slane %v296, 1
    %v327 = vrot.slane %v298, 1
    %v328 = vrot.slane %v301, 1
    %v329 = vrot.slane %v303, 1
    %vm330 = vcmp.lt.s32.totalorder %v95, 7
    %v331 = vsel %vm330, %v328, %v329
    %v332 = vsel %vm330, %v327, %v328
    %v333 = vsel %vm330, %v326, %v327
    %v334 = vsel %vm330, %v329, %v326
    %v335 = vsel %vm322, %v333, 0.0
    %v336 = vsel %vm323, %v332, 0.0
    %v337 = vsel %vm324, %v331, 0.0
    %v338 = vsel %vm325, %v334, 0.0
    %v339 = vadd.f32 %v277, %v318
    %v340 = vadd.f32 %v279, %v319
    %v341 = vadd.f32 %v282, %v320
    %v342 = vadd.f32 %v284, %v321
    %v343 = vadd.f32 %v339, %v335
    %v344 = vadd.f32 %v340, %v336
    %v345 = vadd.f32 %v341, %v337
    %v346 = vadd.f32 %v342, %v338
    %v347 = vadd.f32 %v343, %v344
    %v348 = vadd.f32 %v347, %v345
    %v349 = vadd.f32 %v348, %v346
    %v350 = vrot.slane %v349, 4
    %v351 = vadd.f32 %v349, %v350
    %v352 = vrot.slane %v351, 2
    %v353 = vadd.f32 %v351, %v352
    %v354 = vrot.slane %v353, 1
    %v355 = vadd.f32 %v353, %v354
    %v356 = vmul.f32 %v343, %v343
    %v357 = vmul.f32 %v344, %v344
    %v358 = vmul.f32 %v345, %v345
    %v359 = vmul.f32 %v346, %v346
    %v360 = vadd.f32 %v356, %v357
    %v361 = vadd.f32 %v360, %v358
    %v362 = vadd.f32 %v361, %v359
    %v363 = vrot.slane %v362, 4
    %v364 = vadd.f32 %v362, %v363
    %v365 = vrot.slane %v364, 2
    %v366 = vadd.f32 %v364, %v365
    %v367 = vrot.slane %v366, 1
    %v368 = vadd.f32 %v366, %v367
    %vm369 = vcmask 1040384
    %v370 = vsel %vm369, %v355, %v368
    %v371 = vld [vmem:[#allocation8] sm:$0xff]
    %v372 = vld [vmem:[#allocation8 + $0x8] sm:$0xff]
    %v373 = vld [vmem:[#allocation8 + $0x10] sm:$0xff]
    %v374 = vld [vmem:[#allocation8 + $0x18] sm:$0xff]
    %v375 = vld [vmem:[#allocation8 + $0x20] sm:$0xff]
    %v376 = vld [vmem:[#allocation8 + $0x28] sm:$0xff]
    %v377 = vld [vmem:[#allocation8 + $0x30] sm:$0xff]
    %v378 = vld [vmem:[#allocation8 + $0x38] sm:$0xff]
    %v379 = vld [vmem:[#allocation8 + $0x40] sm:$0xff]
    %v380 = vld [vmem:[#allocation8 + $0x48] sm:$0xff]
    %v381 = vld [vmem:[#allocation8 + $0x50] sm:$0xff]
    %v382 = vld [vmem:[#allocation8 + $0x58] sm:$0xff]
    %v383 = vld [vmem:[#allocation8 + $0x60] sm:$0xff]
    %v384 = vld [vmem:[#allocation8 + $0x68] sm:$0xff]
    %v385 = vld [vmem:[#allocation8 + $0x70] sm:$0xff]
    %v386 = vld [vmem:[#allocation8 + $0x78] sm:$0xff]
    %387 = vmatpush.msra.mxu0 %v386
    %388 = vmatpush.msra.mxu0 %v385
    %389 = vmatpush.msra.mxu0 %v384
    %390 = vmatpush.msra.mxu0 %v383
    %391 = vmatpush.msra.mxu0 %v382
    %392 = vmatpush.msra.mxu0 %v381
    %393 = vmatpush.msra.mxu0 %v380
    %394 = vmatpush.msra.mxu0 %v379
    %395 = vmatpush.msra.mxu0 %v378
    %396 = vmatpush.msra.mxu0 %v377
    %397 = vmatpush.msra.mxu0 %v376
    %398 = vmatpush.msra.mxu0 %v375
    %399 = vmatpush.msra.mxu0 %v374
    %400 = vmatpush.msra.mxu0 %v373
    %401 = vmatpush.msra.mxu0 %v372
    %402 = vmatpush.msra.mxu0 %v371
    %403 = vmatmul.f32.gmra.mxu0 %v370
    %v404 = vpop.f32.mrf.mxu0
    %v405 = vadd.f32 0.0, %v404
    %406 = vdwg.mxu0
    %v407 = vmul.f32 %v405, 0.001953125
    %v408 = vmul.f32 %v407, %v407
    %v410 = vrot.slane %v408, 7
    %v412 = vsub.f32 %v407, %v410
    %v413 = vld [vmem:[%s4] sm:$0x1]
    %v414 = vadd.f32 %v412, 1e-05
    %v415 = vrsqrt.pop %v414
    %v416 = vmul.f32 %v415, %v414
    %v417 = vmul.f32 %v416, %v415
    %v418 = vmul.f32 0.5, %v417
    %v419 = vsub.f32 1.5, %v418
    %v420 = vmul.f32 %v415, %v419
    %vm421 = vweird.f32 %v414
    %vm422 = vweird.f32 %v415
    %vm423 = vmor %vm421, %vm422
    %v424 = vsel %vm423, %v415, %v420
    %426 = vst [vmem:[#allocation1] sm:$0xff] %v424
    %s427 = scalar_lea.vmem [#allocation1], 1
    %v428 = vld [vmem:[%s427] ss:$9 sm:$0xff]
    %v430 = vmul.f32 %v413, %v428
    %v431 = vld [vmem:[%s5] sm:$0x1]
    %v432 = vmul.f32 %v407, %v430
    %v433 = vsub.f32 %v431, %v432
    %v435 = vperm.slane %v430, 0
    %v437 = vmul.f32 %v343, %v435
    %v438 = vmul.f32 %v344, %v435
    %v439 = vmul.f32 %v345, %v435
    %v440 = vmul.f32 %v346, %v435
    %v442 = vperm.slane %v433, 0
    %v444 = vadd.f32 %v437, %v442
    %v445 = vadd.f32 %v438, %v442
    %v446 = vadd.f32 %v439, %v442
    %v447 = vadd.f32 %v440, %v442
    %v448 = vmax.f32 %v444, 0.0
    %v449 = vmax.f32 %v445, 0.0
    %v450 = vmax.f32 %v446, 0.0
    %v451 = vmax.f32 %v447, 0.0
    %v452 = vpack.c.bf16 %v449, %v448
    %v453 = vpack.c.bf16 %v451, %v450
    %v454 = vld [vmem:[#allocation7] sm:$0xff]
    %v455 = vld [vmem:[#allocation7 + $0x8] sm:$0xf]
    %v456 = vld [vmem:[#allocation7 + $0xc] sm:$0xff]
    %v457 = vld [vmem:[#allocation7 + $0x14] sm:$0xf]
    %v458 = vld [vmem:[#allocation7 + $0x18] sm:$0xff]
    %v459 = vld [vmem:[#allocation7 + $0x20] sm:$0xf]
    %v460 = vld [vmem:[#allocation7 + $0x24] sm:$0xff]
    %v461 = vld [vmem:[#allocation7 + $0x2c] sm:$0xf]
    %v462 = vld [vmem:[#allocation7 + $0x30] sm:$0xff]
    %v463 = vld [vmem:[#allocation7 + $0x38] sm:$0xf]
    %v464 = vld [vmem:[#allocation7 + $0x3c] sm:$0xff]
    %v465 = vld [vmem:[#allocation7 + $0x44] sm:$0xf]
    %v466 = vld [vmem:[#allocation7 + $0x48] sm:$0xff]
    %v467 = vld [vmem:[#allocation7 + $0x50] sm:$0xf]
    %v468 = vld [vmem:[#allocation7 + $0x54] sm:$0xff]
    %v469 = vld [vmem:[#allocation7 + $0x5c] sm:$0xf]
    %v470 = vld [vmem:[#allocation7 + $0x60] sm:$0xff]
    %v471 = vld [vmem:[#allocation7 + $0x68] sm:$0xf]
    %v472 = vld [vmem:[#allocation7 + $0x6c] sm:$0xff]
    %v473 = vld [vmem:[#allocation7 + $0x74] sm:$0xf]
    %v474 = vld [vmem:[#allocation7 + $0x78] sm:$0xff]
    %v475 = vld [vmem:[#allocation7 + $0x80] sm:$0xf]
    %v476 = vld [vmem:[#allocation7 + $0x84] sm:$0xff]
    %v477 = vld [vmem:[#allocation7 + $0x8c] sm:$0xf]
    %v478 = vld [vmem:[#allocation7 + $0x90] sm:$0xff]
    %v479 = vld [vmem:[#allocation7 + $0x98] sm:$0xf]
    %v480 = vld [vmem:[#allocation7 + $0x9c] sm:$0xff]
    %v481 = vld [vmem:[#allocation7 + $0xa4] sm:$0xf]
    %v482 = vld [vmem:[#allocation7 + $0xa8] sm:$0xff]
    %v483 = vld [vmem:[#allocation7 + $0xb0] sm:$0xf]
    %v484 = vld [vmem:[#allocation7 + $0xb4] sm:$0xff]
    %v485 = vld [vmem:[#allocation7 + $0xbc] sm:$0xf]
    %v518 = vunpack.c.l.b16 %v454
    %v519 = vunpack.c.h.b16 %v454
    %v520 = vunpack.c.l.b16 %v455
    %v521 = vunpack.c.l.b16 %v456
    %v522 = vunpack.c.h.b16 %v456
    %v523 = vunpack.c.l.b16 %v457
    %v524 = vunpack.c.l.b16 %v458
    %v525 = vunpack.c.h.b16 %v458
    %v526 = vunpack.c.l.b16 %v459
    %v527 = vunpack.c.l.b16 %v460
    %v528 = vunpack.c.h.b16 %v460
    %v529 = vunpack.c.l.b16 %v461
    %v530 = vunpack.c.l.b16 %v462
    %v531 = vunpack.c.h.b16 %v462
    %v532 = vunpack.c.l.b16 %v463
    %v533 = vunpack.c.l.b16 %v464
    %v534 = vunpack.c.h.b16 %v464
    %v535 = vunpack.c.l.b16 %v465
    %v536 = vunpack.c.l.b16 %v466
    %v537 = vunpack.c.h.b16 %v466
    %v538 = vunpack.c.l.b16 %v467
    %v539 = vunpack.c.l.b16 %v468
    %v540 = vunpack.c.h.b16 %v468
    %v541 = vunpack.c.l.b16 %v469
    %v542 = vunpack.c.l.b16 %v470
    %v543 = vunpack.c.h.b16 %v470
    %v544 = vunpack.c.l.b16 %v471
    %v545 = vunpack.c.l.b16 %v472
    %v546 = vunpack.c.h.b16 %v472
    %v547 = vunpack.c.l.b16 %v473
    %v548 = vunpack.c.l.b16 %v474
    %v549 = vunpack.c.h.b16 %v474
    %v550 = vunpack.c.l.b16 %v475
    %v551 = vunpack.c.l.b16 %v476
    %v552 = vunpack.c.h.b16 %v476
    %v553 = vunpack.c.l.b16 %v477
    %v554 = vunpack.c.l.b16 %v478
    %v555 = vunpack.c.h.b16 %v478
    %v556 = vunpack.c.l.b16 %v479
    %v557 = vunpack.c.l.b16 %v480
    %v558 = vunpack.c.h.b16 %v480
    %v559 = vunpack.c.l.b16 %v481
    %v560 = vunpack.c.l.b16 %v482
    %v561 = vunpack.c.h.b16 %v482
    %v562 = vunpack.c.l.b16 %v483
    %v563 = vunpack.c.l.b16 %v484
    %v564 = vunpack.c.h.b16 %v484
    %v565 = vunpack.c.l.b16 %v485
    %v566 = vpack.c.b16 %v521, %v518
    %v567 = vpack.c.b16 %v522, %v519
    %v568 = vpack.c.b16 %v523, %v520
    %v569 = vpack.c.b16 %v527, %v524
    %v570 = vpack.c.b16 %v528, %v525
    %v571 = vpack.c.b16 %v529, %v526
    %v572 = vpack.c.b16 %v533, %v530
    %v573 = vpack.c.b16 %v534, %v531
    %v574 = vpack.c.b16 %v535, %v532
    %v575 = vpack.c.b16 %v539, %v536
    %v576 = vpack.c.b16 %v540, %v537
    %v577 = vpack.c.b16 %v541, %v538
    %v578 = vpack.c.b16 %v545, %v542
    %v579 = vpack.c.b16 %v546, %v543
    %v580 = vpack.c.b16 %v547, %v544
    %v581 = vpack.c.b16 %v551, %v548
    %v582 = vpack.c.b16 %v552, %v549
    %v583 = vpack.c.b16 %v553, %v550
    %v584 = vpack.c.b16 %v557, %v554
    %v585 = vpack.c.b16 %v558, %v555
    %v586 = vpack.c.b16 %v559, %v556
    %v587 = vpack.c.b16 %v563, %v560
    %v588 = vpack.c.b16 %v564, %v561
    %v589 = vpack.c.b16 %v565, %v562
    %614 = vmatpush.bf16.msra.mxu0 %v587
    %615 = vmatpush.bf16.msra.mxu0 %v584
    %616 = vmatpush.bf16.msra.mxu0 %v581
    %617 = vmatpush.bf16.msra.mxu0 %v578
    %618 = vmatpush.bf16.msra.mxu0 %v575
    %619 = vmatpush.bf16.msra.mxu0 %v572
    %620 = vmatpush.bf16.msra.mxu0 %v569
    %621 = vmatpush.bf16.msra.mxu0 %v566
    %622 = vmatmul.bf16.gmra.mxu0 %v452
    %v623 = vpop.f32.mrf.mxu0
    %v624 = vadd.f32 0.0, %v623
    %v625 = vpop.f32.mrf.mxu0
    %v626 = vadd.f32 0.0, %v625
    %627 = vmatmul.bf16.gmra.mxu0 %v453
    %v628 = vpop.f32.mrf.mxu0
    %v629 = vadd.f32 0.0, %v628
    %v630 = vpop.f32.mrf.mxu0
    %v631 = vadd.f32 0.0, %v630
    %632 = vdwg.mxu0
    %633 = vmatpush.bf16.msra.mxu0 %v588
    %634 = vmatpush.bf16.msra.mxu0 %v585
    %635 = vmatpush.bf16.msra.mxu0 %v582
    %636 = vmatpush.bf16.msra.mxu0 %v579
    %637 = vmatpush.bf16.msra.mxu0 %v576
    %638 = vmatpush.bf16.msra.mxu0 %v573
    %639 = vmatpush.bf16.msra.mxu0 %v570
    %640 = vmatpush.bf16.msra.mxu0 %v567
    %641 = vmatmul.bf16.gmra.mxu0 %v452
    %v642 = vpop.f32.mrf.mxu0
    %v643 = vadd.f32 0.0, %v642
    %v644 = vpop.f32.mrf.mxu0
    %v645 = vadd.f32 0.0, %v644
    %646 = vmatmul.bf16.gmra.mxu0 %v453
    %v647 = vpop.f32.mrf.mxu0
    %v648 = vadd.f32 0.0, %v647
    %v649 = vpop.f32.mrf.mxu0
    %v650 = vadd.f32 0.0, %v649
    %651 = vdwg.mxu0
    %652 = vmatpush.bf16.msra.mxu0 %v589
    %653 = vmatpush.bf16.msra.mxu0 %v586
    %654 = vmatpush.bf16.msra.mxu0 %v583
    %655 = vmatpush.bf16.msra.mxu0 %v580
    %656 = vmatpush.bf16.msra.mxu0 %v577
    %657 = vmatpush.bf16.msra.mxu0 %v574
    %658 = vmatpush.bf16.msra.mxu0 %v571
    %659 = vmatpush.bf16.msra.mxu0 %v568
    %660 = vmatmul.bf16.gmra.mxu0 %v452
    %v661 = vpop.f32.mrf.mxu0
    %v662 = vadd.f32 0.0, %v661
    %v663 = vpop.f32.mrf.mxu0
    %v664 = vadd.f32 0.0, %v663
    %665 = vmatmul.bf16.gmra.mxu0 %v453
    %v666 = vpop.f32.mrf.mxu0
    %v667 = vadd.f32 0.0, %v666
    %v668 = vpop.f32.mrf.mxu0
    %v669 = vadd.f32 0.0, %v668
    %670 = vdwg.mxu0
    %v671 = vrot.slane %v624, 7
    %v672 = vrot.slane %v626, 7
    %v673 = vrot.slane %v629, 7
    %v674 = vrot.slane %v631, 7
    %v675 = vsel %vm313, %v673, %v674
    %v676 = vsel %vm313, %v672, %v673
    %v677 = vsel %vm313, %v671, %v672
    %v678 = vsel %vm313, %v674, %v671
    %v679 = vsel %vm305, %v678, 0.0
    %v680 = vsel %vm306, %v677, 0.0
    %v681 = vsel %vm307, %v676, 0.0
    %v682 = vsel %vm308, %v675, 0.0
    %v683 = vrot.slane %v662, 1
    %v684 = vrot.slane %v664, 1
    %v685 = vrot.slane %v667, 1
    %v686 = vrot.slane %v669, 1
    %v687 = vsel %vm330, %v685, %v686
    %v688 = vsel %vm330, %v684, %v685
    %v689 = vsel %vm330, %v683, %v684
    %v690 = vsel %vm330, %v686, %v683
    %v691 = vsel %vm322, %v689, 0.0
    %v692 = vsel %vm323, %v688, 0.0
    %v693 = vsel %vm324, %v687, 0.0
    %v694 = vsel %vm325, %v690, 0.0
    %v695 = vadd.f32 %v643, %v679
    %v696 = vadd.f32 %v645, %v680
    %v697 = vadd.f32 %v648, %v681
    %v698 = vadd.f32 %v650, %v682
    %v699 = vadd.f32 %v695, %v691
    %v700 = vadd.f32 %v696, %v692
    %v701 = vadd.f32 %v697, %v693
    %v702 = vadd.f32 %v698, %v694
    %v703 = vadd.f32 %v699, %v700
    %v704 = vadd.f32 %v703, %v701
    %v705 = vadd.f32 %v704, %v702
    %v706 = vrot.slane %v705, 4
    %v707 = vadd.f32 %v705, %v706
    %v708 = vrot.slane %v707, 2
    %v709 = vadd.f32 %v707, %v708
    %v710 = vrot.slane %v709, 1
    %v711 = vadd.f32 %v709, %v710
    %v712 = vmul.f32 %v699, %v699
    %v713 = vmul.f32 %v700, %v700
    %v714 = vmul.f32 %v701, %v701
    %v715 = vmul.f32 %v702, %v702
    %v716 = vadd.f32 %v712, %v713
    %v717 = vadd.f32 %v716, %v714
    %v718 = vadd.f32 %v717, %v715
    %v719 = vrot.slane %v718, 4
    %v720 = vadd.f32 %v718, %v719
    %v721 = vrot.slane %v720, 2
    %v722 = vadd.f32 %v720, %v721
    %v723 = vrot.slane %v722, 1
    %v724 = vadd.f32 %v722, %v723
    %v725 = vsel %vm369, %v711, %v724
    %726 = vmatpush.msra.mxu0 %v386
    %727 = vmatpush.msra.mxu0 %v385
    %728 = vmatpush.msra.mxu0 %v384
    %729 = vmatpush.msra.mxu0 %v383
    %730 = vmatpush.msra.mxu0 %v382
    %731 = vmatpush.msra.mxu0 %v381
    %732 = vmatpush.msra.mxu0 %v380
    %733 = vmatpush.msra.mxu0 %v379
    %734 = vmatpush.msra.mxu0 %v378
    %735 = vmatpush.msra.mxu0 %v377
    %736 = vmatpush.msra.mxu0 %v376
    %737 = vmatpush.msra.mxu0 %v375
    %738 = vmatpush.msra.mxu0 %v374
    %739 = vmatpush.msra.mxu0 %v373
    %740 = vmatpush.msra.mxu0 %v372
    %741 = vmatpush.msra.mxu0 %v371
    %742 = vmatmul.f32.gmra.mxu0 %v725
    %v743 = vpop.f32.mrf.mxu0
    %v744 = vadd.f32 0.0, %v743
    %745 = vdwg.mxu0
    %v746 = vmul.f32 %v744, 0.001953125
    %v747 = vmul.f32 %v746, %v746
    %v749 = vrot.slane %v747, 7
    %v751 = vsub.f32 %v746, %v749
    %v752 = vld [vmem:[%s6] sm:$0x1]
    %v753 = vadd.f32 %v751, 1e-05
    %v754 = vrsqrt.pop %v753
    %v755 = vmul.f32 %v754, %v753
    %v756 = vmul.f32 %v755, %v754
    %v757 = vmul.f32 0.5, %v756
    %v758 = vsub.f32 1.5, %v757
    %v759 = vmul.f32 %v754, %v758
    %vm760 = vweird.f32 %v753
    %vm761 = vweird.f32 %v754
    %vm762 = vmor %vm760, %vm761
    %v763 = vsel %vm762, %v754, %v759
    %765 = vst [vmem:[#allocation1] sm:$0xff] %v763
    %s766 = scalar_lea.vmem [#allocation1], 1
    %v767 = vld [vmem:[%s766] ss:$9 sm:$0xff]
    %v769 = vmul.f32 %v752, %v767
    %v770 = vld [vmem:[%s7] sm:$0x1]
    %v771 = vmul.f32 %v746, %v769
    %v772 = vsub.f32 %v770, %v771
    %v774 = vperm.slane %v769, 0
    %v776 = vmul.f32 %v699, %v774
    %v777 = vmul.f32 %v700, %v774
    %v778 = vmul.f32 %v701, %v774
    %v779 = vmul.f32 %v702, %v774
    %v781 = vperm.slane %v772, 0
    %v783 = vadd.f32 %v776, %v781
    %v784 = vadd.f32 %v777, %v781
    %v785 = vadd.f32 %v778, %v781
    %v786 = vadd.f32 %v779, %v781
    %v787 = vmax.f32 %v783, 0.0
    %v788 = vmax.f32 %v784, 0.0
    %v789 = vmax.f32 %v785, 0.0
    %v790 = vmax.f32 %v786, 0.0
    %791 = vst [vmem:[#allocation10] sm:$0xff] %v787
    %792 = vst [vmem:[#allocation10 + $0x8] sm:$0xff] %v788
    %793 = vst [vmem:[#allocation10 + $0x10] sm:$0xff] %v789
    %794 = vst [vmem:[#allocation10 + $0x18] sm:$0xff] %v790
    // Predicated region
    $region50: #{tpu_custom_call.1} parent=1 // pred_check
      _
    $region51: #{tpu_custom_call.1} parent=1 // pred_check_branch
      %796 = sbr.rel (0) target = $region53
    $region52: #{tpu_custom_call.1} parent=1 // pred_region
      %798 = vsyncadd [#allocation4], 0
      %s799 = sshll.u32 [#allocation10], 4
      %s800 = int_to_ptr.vmem [resolvable:$true] %s799
      %s801 = sshll.u32 %s8, 4
      %s802 = int_to_ptr.hbm [resolvable:$true] %s801
      %807 = dma.vmem_to_hbm [thread:$0]  %s800, 512, %s802, [#allocation4], 128, 128, 8
    $region53: #{tpu_custom_call.1} parent=1 // pred_fallthru
      _
    // Predicated region
    $region54: #{tpu_custom_call.1} parent=1 // pred_check
      _
    $region55: #{tpu_custom_call.1} parent=1 // pred_check_branch
      %809 = sbr.rel (0) target = $region57
    $region56: #{tpu_custom_call.1} parent=1 // pred_region
      %811 = dma.done [#allocation4], 512
    $region57: #{tpu_custom_call.1} parent=1 // pred_fallthru
      _
    %812 = vsyncpa [#allocation3], 1
    %813 = vsyncpa [#allocation6], 1
    %814 = vsyncpa [#allocation9], 1
    %815 = vsyncpa [#allocation4], 1

</llo_original>
